<compile_context>
chip_gen: v7x
topology: tpu7x:2x2x1
jax: 0.10.0
libtpu: 0.0.40
codegen_flags: <defaults>
</compile_context>

<pallas_src>
import functools

import jax
import jax.numpy as jnp
import numpy as np
from jax.experimental import pallas as pl
from jax.experimental.pallas import tpu as pltpu


# ----------------------------------------------------------------------------
# Parameter construction (deterministic, synthetic)
# ----------------------------------------------------------------------------
def _bn_affine(key):
    """Return (scale, shift) of an eval-mode BatchNorm2d(1) with synthetic params."""
    k1, k2, k3, k4 = jax.random.split(key, 4)
    gamma = 1.0 + 0.1 * float(jax.random.normal(k1, ()))
    beta = 0.1 * float(jax.random.normal(k2, ()))
    running_mean = 0.1 * float(jax.random.normal(k3, ()))
    running_var = 1.0 + 0.2 * float(jax.random.uniform(k4, ()))
    eps = 1e-5
    scale = gamma / np.sqrt(running_var + eps)
    shift = beta - running_mean * scale
    return float(scale), float(shift)


def make_repblock_params(key):
    """Synthetic RepBlock(1, 1) parameters, BN folded to affine coefficients."""
    keys = jax.random.split(key, 16)
    p = {}
    # ----- stage 1 -----
    # brb_1x1: conv(1x1, no bias) -> bn
    w11 = 0.5 * float(jax.random.normal(keys[0], ()))
    s, b = _bn_affine(keys[1])
    p["s1_11_s"], p["s1_11_b"] = w11 * s, b
    # brb_3x3: conv1(1x1) -> bn1 -> conv2(3x3, pad 1) -> bn2
    wc1 = 0.5 * float(jax.random.normal(keys[2], ()))
    a1, b1 = _bn_affine(keys[3])
    p["s1_3pre_s"], p["s1_3pre_b"] = wc1 * a1, b1
    p["K1"] = np.asarray(0.5 * jax.random.normal(keys[4], (3, 3)), dtype=np.float32)
    p["s1_3post_s"], p["s1_3post_b"] = _bn_affine(keys[5])
    # brb_identity: BatchNorm2d(1)
    p["id_s"], p["id_b"] = _bn_affine(keys[6])
    # ----- stage 2 -----
    w11 = 0.5 * float(jax.random.normal(keys[7], ()))
    s, b = _bn_affine(keys[8])
    p["s2_11_s"], p["s2_11_b"] = w11 * s, b
    wc1 = 0.5 * float(jax.random.normal(keys[9], ()))
    a1, b1 = _bn_affine(keys[10])
    p["s2_3pre_s"], p["s2_3pre_b"] = wc1 * a1, b1
    p["K2"] = np.asarray(0.5 * jax.random.normal(keys[11], (3, 3)), dtype=np.float32)
    p["s2_3post_s"], p["s2_3post_b"] = _bn_affine(keys[12])
    # NOTE: brb_identity_2 exists in the torch module but its forward (faithfully
    # reproduced here) reuses brb_identity for the second stage, so its params are unused.
    return p


# ----------------------------------------------------------------------------
# Pallas kernel
# ----------------------------------------------------------------------------
def _local_perceptron_kernel(x_ref, e_ref, o_ref, *, p, h, w, dim, bt):
    """One grid step: `bt` batches, stacked as a (bt*h, w) spatial map."""
    hs = bt * h
    wd = w * dim

    # Lane-dense activation slab and the resident one-hot expand operator.
    xb = x_ref[...].reshape(hs, wd)                  # (bt*h, w*dim) f32, free reshape
    expand = e_ref[...]                              # (w, w*dim), expand[j, l] = (l//dim == j)

    # Per-token channel mean via a transposed contraction against `expand`
    # (no separate pool matrix; the MXU handles the transposed operand for free).
    m = jax.lax.dot_general(
        xb, expand, (((1,), (1,)), ((), ())),
        preferred_element_type=jnp.float32) * (1.0 / dim)                  # (hs, w)

    row = jax.lax.broadcasted_iota(jnp.int32, (hs, w), 0)
    rb = row % h                                     # per-batch row index (batch folding)
    col = jax.lax.broadcasted_iota(jnp.int32, (hs, w), 1)

    def conv3x3(v, K):
        """3x3 zero-padded cross-correlation on the stacked map (separable form).

        2 masked column shifts + 3 horizontal FMA combinations + 2 masked vertical
        shifts = 4 rolls + 4 selects (was 8 + 8). Vertical masks use the per-batch
        row index so rolls that wrap across batch boundaries are zeroed.
        """
        left = jnp.where(col >= 1, pltpu.roll(v, shift=1, axis=1), 0.0)          # v[:, j-1]
        right = jnp.where(col < w - 1, pltpu.roll(v, shift=w - 1, axis=1), 0.0)  # v[:, j+1]

        def hcomb(r):
            return float(K[r, 0]) * left + float(K[r, 1]) * v + float(K[r, 2]) * right

        h_top, h_mid, h_bot = hcomb(0), hcomb(1), hcomb(2)
        top = jnp.where(rb >= 1, pltpu.roll(h_top, shift=1, axis=0), 0.0)            # h_top[i-1]
        bot = jnp.where(rb < h - 1, pltpu.roll(h_bot, shift=hs - 1, axis=0), 0.0)    # h_bot[i+1]
        return top + h_mid + bot

    # ---- RepBlock stage 1: relu(brb_1x1(u) + brb_3x3(u) + brb_identity(u)) ----
    y11 = p["s1_11_s"] * m + p["s1_11_b"]
    v = p["s1_3pre_s"] * m + p["s1_3pre_b"]
    y33 = p["s1_3post_s"] * conv3x3(v, p["K1"]) + p["s1_3post_b"]
    yid = p["id_s"] * m + p["id_b"]
    out1 = jnp.maximum(y11 + y33 + yid, 0.0)

    # ---- stage 2 (identity branch reuses stage-1 BN, matching the torch forward) ----
    y11 = p["s2_11_s"] * out1 + p["s2_11_b"]
    v = p["s2_3pre_s"] * out1 + p["s2_3pre_b"]
    y33 = p["s2_3post_s"] * conv3x3(v, p["K2"]) + p["s2_3post_b"]
    yid = p["id_s"] * out1 + p["id_b"]
    wgt = jax.nn.sigmoid(y11 + y33 + yid)            # (hs, w) per-token gate

    # Expand the per-token gate to the lane-dense slab and apply; full-width vst.
    gate = jnp.dot(wgt, expand, preferred_element_type=jnp.float32)        # (hs, wd)
    o_ref[...] = (xb * (1.0 + gate)).reshape(bt, h, wd)


def local_perceptron_pallas(x, params, *, batch_tile=None):
    bs, n, dim = x.shape
    h = w = int(round(np.sqrt(n)))
    assert h * w == n, "token count must be a perfect square"
    wd = w * dim
    assert wd % 128 == 0 and h % 8 == 0, "need lane-dense (h, w*dim) tiles"

    if batch_tile is None:
        # Two "parallel" grid steps when possible (one per v7x TensorCore); each step
        # folds bs//2 batches to amortize per-step overhead. Single-TC v5e/v6e users
        # can pass batch_tile=bs for grid=(1,).
        batch_tile = bs // 2 if (bs >= 2 and bs % 2 == 0) else bs
    assert bs % batch_tile == 0
    steps = bs // batch_tile

    # Free contiguous reshape: (bs, n, dim) -> (bs, h, w*dim). Bulk load + gated store
    # then run on 512-lane rows instead of dim=32-lane masked partial stores.
    xr = jnp.reshape(x, (bs, h, wd))

    # One-hot expand operator built once host-side: expand[j, l] = 1 iff l // dim == j.
    # Constant index_map keeps it resident in VMEM across grid steps (copy elided).
    lane = np.arange(wd)
    expand = jnp.asarray((lane[None, :] // dim == np.arange(w)[:, None]).astype(np.float32))

    kernel = functools.partial(_local_perceptron_kernel,
                               p=params, h=h, w=w, dim=dim, bt=batch_tile)

    # Advisory cost estimate: mean contraction + two 9-tap convs + expand matmul + gating.
    flops_per_batch = 2 * h * wd * w + 2 * (2 * 9 * h * w) + 2 * h * w * wd + 2 * h * wd
    cost = pl.CostEstimate(
        flops=bs * flops_per_batch,
        transcendentals=bs * h * w,                      # sigmoid
        bytes_accessed=2 * bs * h * wd * 4 + w * wd * 4, # read x + expand, write out
    )

    out = pl.pallas_call(
        kernel,
        out_shape=jax.ShapeDtypeStruct((bs, h, wd), jnp.float32),
        grid_spec=pltpu.PrefetchScalarGridSpec(
            num_scalar_prefetch=0,
            grid=(steps,),
            in_specs=[pl.BlockSpec((batch_tile, h, wd), lambda b: (b, 0, 0)),
                      pl.BlockSpec((w, wd), lambda b: (0, 0))],
            out_specs=pl.BlockSpec((batch_tile, h, wd), lambda b: (b, 0, 0)),
        ),
        compiler_params=pltpu.CompilerParams(dimension_semantics=("parallel",)),
        cost_estimate=cost,
        # Output matches the reshaped input exactly; lets a donating caller reuse the
        # HBM buffer (XLA inserts a defensive copy if x is not donated).
        input_output_aliases={0: 0},
    )(xr, expand)
    return jnp.reshape(out, (bs, n, dim))


# ----------------------------------------------------------------------------
# Pure-JAX reference (independent NCHW path) for validation
# ----------------------------------------------------------------------------
def local_perceptron_reference(x, p):
    bs, n, dim = x.shape
    h = w = int(round(np.sqrt(n)))
    inp = jnp.transpose(jnp.reshape(x, (bs, h, w, dim)), (0, 3, 1, 2))   # NCHW
    m = jnp.mean(inp, axis=1, keepdims=True)                             # (bs,1,h,w)

    def conv3(img, K):
        pad = jnp.pad(img, ((0, 0), (0, 0), (1, 1), (1, 1)))
        out = jnp.zeros_like(img)
        for dy in range(3):
            for dx in range(3):
                out = out + K[dy, dx] * pad[:, :, dy:dy + h, dx:dx + w]
        return out

    K1 = jnp.asarray(p["K1"])
    K2 = jnp.asarray(p["K2"])

    y11 = p["s1_11_s"] * m + p["s1_11_b"]
    y33 = p["s1_3post_s"] * conv3(p["s1_3pre_s"] * m + p["s1_3pre_b"], K1) + p["s1_3post_b"]
    yid = p["id_s"] * m + p["id_b"]
    out1 = jnp.maximum(y11 + y33 + yid, 0.0)

    y11 = p["s2_11_s"] * out1 + p["s2_11_b"]
    y33 = p["s2_3post_s"] * conv3(p["s2_3pre_s"] * out1 + p["s2_3pre_b"], K2) + p["s2_3post_b"]
    yid = p["id_s"] * out1 + p["id_b"]
    weight = jax.nn.sigmoid(y11 + y33 + yid)

    out = inp * (1.0 + weight)                                           # (bs,dim,h,w)
    return jnp.transpose(jnp.reshape(out, (bs, dim, n)), (0, 2, 1))      # (bs,n,dim)


# ----------------------------------------------------------------------------
if __name__ == "__main__":
    bs, h, w, dim = 2, 16, 16, 32
    n = h * w

    params = make_repblock_params(jax.random.PRNGKey(42))
    x = jax.random.normal(jax.random.PRNGKey(0), (bs, n, dim), dtype=jnp.float32)

    ref = jax.block_until_ready(local_perceptron_reference(x, params))

    # Default tiling: grid=(2,), one batch per step (parallel across v7x TCs).
    out = jax.block_until_ready(local_perceptron_pallas(x, params))
    assert out.shape == (bs, n, dim)
    # Tolerance leaves margin for MXU f32 accumulation order; structural errors are >=1e-2.
    np.testing.assert_allclose(np.asarray(out), np.asarray(ref), rtol=1e-3, atol=1e-3)

    # Fully folded variant (grid=(1,)) — exercises the per-batch row masking of the
    # vertical conv taps across stacked batch boundaries (v5e/v6e configuration).
    out_folded = jax.block_until_ready(local_perceptron_pallas(x, params, batch_tile=bs))
    np.testing.assert_allclose(np.asarray(out_folded), np.asarray(ref), rtol=1e-3, atol=1e-3)

    print("KERNEL_OK")
</pallas_src>

<mosaic_0001>
module attributes {stable_mosaic.version = 11 : i64} {
  func.func @_local_perceptron_kernel(%arg0: i32, %arg1: memref<1x16x512xf32, #tpu.memory_space<vmem>>, %arg2: memref<16x512xf32, #tpu.memory_space<vmem>>, %arg3: memref<1x16x512xf32, #tpu.memory_space<vmem>>) attributes {dimension_semantics = [#tpu.dimension_semantics<parallel>], iteration_bounds = array<i64: 2>, scalar_prefetch = 0 : i64, scratch_operands = 0 : i64, tpu.core_type = #tpu.core_type<tc>, window_params = [{transform_indices = @transform_0, window_bounds = array<i64: 1, 16, 512>}, {pipeline_mode = #tpu.pipeline_mode<synchronous>, transform_indices = @transform_1, window_bounds = array<i64: 16, 512>}, {transform_indices = @transform_2, window_bounds = array<i64: 1, 16, 512>}]} {
    %c0 = arith.constant 0 : index
    %c0_0 = arith.constant 0 : index
    %c0_1 = arith.constant 0 : index
    %0 = vector.load %arg1[%c0, %c0_0, %c0_1] : memref<1x16x512xf32, #tpu.memory_space<vmem>>, vector<1x16x512xf32>
    %1 = vector.shape_cast %0 : vector<1x16x512xf32> to vector<16x512xf32>
    %c0_2 = arith.constant 0 : index
    %c0_3 = arith.constant 0 : index
    %2 = vector.load %arg2[%c0_2, %c0_3] : memref<16x512xf32, #tpu.memory_space<vmem>>, vector<16x512xf32>
    %cst = arith.constant dense<0.000000e+00> : vector<16x16xf32>
    %3 = tpu.matmul %1, %2, %cst {dimension_numbers = #tpu.dot_dimension_numbers<[1], [1], [0], [0], [0, 0, 1, 0], [], []>} : vector<16x512xf32>, vector<16x512xf32>, vector<16x16xf32> -> vector<16x16xf32>
    %cst_4 = arith.constant 3.125000e-02 : f32
    %4 = vector.broadcast %cst_4 : f32 to vector<16x16xf32>
    %5 = arith.mulf %3, %4 : vector<16x16xf32>
    %6 = tpu.iota {dimensions = array<i32: 0>} : vector<16x16xi32>
    %c16_i32 = arith.constant 16 : i32
    %c0_i32 = arith.constant 0 : i32
    %7 = arith.cmpi eq, %c16_i32, %c0_i32 : i32
    %c1_i32 = arith.constant 1 : i32
    %8 = arith.select %7, %c1_i32, %c16_i32 : i32
    %9 = vector.broadcast %8 : i32 to vector<16x16xi32>
    %10 = arith.remsi %6, %9 : vector<16x16xi32>
    %c0_i32_5 = arith.constant 0 : i32
    %11 = vector.broadcast %c0_i32_5 : i32 to vector<16x16xi32>
    %12 = arith.cmpi ne, %10, %11 : vector<16x16xi32>
    %c0_i32_6 = arith.constant 0 : i32
    %13 = vector.broadcast %c0_i32_6 : i32 to vector<16x16xi32>
    %14 = arith.cmpi slt, %10, %13 : vector<16x16xi32>
    %c0_i32_7 = arith.constant 0 : i32
    %15 = arith.cmpi slt, %8, %c0_i32_7 : i32
    %16 = vector.broadcast %15 : i1 to vector<16x16xi1>
    %17 = vector.broadcast %16 : vector<16x16xi1> to vector<16x16xi1>
    %18 = arith.xori %14, %17 : vector<16x16xi1>
    %19 = arith.andi %18, %12 : vector<16x16xi1>
    %20 = vector.broadcast %8 : i32 to vector<16x16xi32>
    %21 = arith.addi %10, %20 : vector<16x16xi32>
    %22 = arith.select %19, %21, %10 : vector<16x16xi1>, vector<16x16xi32>
    %23 = tpu.iota {dimensions = array<i32: 1>} : vector<16x16xi32>
    %cst_8 = arith.constant 0.0330620036 : f32
    %24 = vector.broadcast %cst_8 : f32 to vector<16x16xf32>
    %25 = arith.mulf %24, %5 : vector<16x16xf32>
    %cst_9 = arith.constant -0.189219698 : f32
    %26 = vector.broadcast %cst_9 : f32 to vector<16x16xf32>
    %27 = arith.addf %25, %26 : vector<16x16xf32>
    %cst_10 = arith.constant 0.193503797 : f32
    %28 = vector.broadcast %cst_10 : f32 to vector<16x16xf32>
    %29 = arith.mulf %28, %5 : vector<16x16xf32>
    %cst_11 = arith.constant -0.0584300384 : f32
    %30 = vector.broadcast %cst_11 : f32 to vector<16x16xf32>
    %31 = arith.addf %29, %30 : vector<16x16xf32>
    %c1_i32_12 = arith.constant 1 : i32
    %32 = vector.broadcast %c1_i32_12 : i32 to vector<16x16xi32>
    %33 = arith.cmpi sge, %23, %32 : vector<16x16xi32>
    %c1_i32_13 = arith.constant 1 : i32
    %34 = tpu.dynamic_rotate %31 by %c1_i32_13 dim 1 : vector<16x16xf32>, i32 -> vector<16x16xf32>
    %cst_14 = arith.constant 0.000000e+00 : f32
    %35 = vector.broadcast %cst_14 : f32 to vector<16x16xf32>
    %36 = arith.select %33, %34, %35 : vector<16x16xi1>, vector<16x16xf32>
    %c15_i32 = arith.constant 15 : i32
    %37 = vector.broadcast %c15_i32 : i32 to vector<16x16xi32>
    %38 = arith.cmpi slt, %23, %37 : vector<16x16xi32>
    %c15_i32_15 = arith.constant 15 : i32
    %39 = tpu.dynamic_rotate %31 by %c15_i32_15 dim 1 : vector<16x16xf32>, i32 -> vector<16x16xf32>
    %cst_16 = arith.constant 0.000000e+00 : f32
    %40 = vector.broadcast %cst_16 : f32 to vector<16x16xf32>
    %41 = arith.select %38, %39, %40 : vector<16x16xi1>, vector<16x16xf32>
    %cst_17 = arith.constant 0.327458888 : f32
    %42 = vector.broadcast %cst_17 : f32 to vector<16x16xf32>
    %43 = arith.mulf %42, %36 : vector<16x16xf32>
    %cst_18 = arith.constant 0.0867260695 : f32
    %44 = vector.broadcast %cst_18 : f32 to vector<16x16xf32>
    %45 = arith.mulf %44, %31 : vector<16x16xf32>
    %46 = arith.addf %43, %45 : vector<16x16xf32>
    %cst_19 = arith.constant 0.800920248 : f32
    %47 = vector.broadcast %cst_19 : f32 to vector<16x16xf32>
    %48 = arith.mulf %47, %41 : vector<16x16xf32>
    %49 = arith.addf %46, %48 : vector<16x16xf32>
    %cst_20 = arith.constant 0.386534393 : f32
    %50 = vector.broadcast %cst_20 : f32 to vector<16x16xf32>
    %51 = arith.mulf %50, %36 : vector<16x16xf32>
    %cst_21 = arith.constant 0.3760176 : f32
    %52 = vector.broadcast %cst_21 : f32 to vector<16x16xf32>
    %53 = arith.mulf %52, %31 : vector<16x16xf32>
    %54 = arith.addf %51, %53 : vector<16x16xf32>
    %cst_22 = arith.constant 0.135087654 : f32
    %55 = vector.broadcast %cst_22 : f32 to vector<16x16xf32>
    %56 = arith.mulf %55, %41 : vector<16x16xf32>
    %57 = arith.addf %54, %56 : vector<16x16xf32>
    %cst_23 = arith.constant 0.174180061 : f32
    %58 = vector.broadcast %cst_23 : f32 to vector<16x16xf32>
    %59 = arith.mulf %58, %36 : vector<16x16xf32>
    %cst_24 = arith.constant -0.0622268952 : f32
    %60 = vector.broadcast %cst_24 : f32 to vector<16x16xf32>
    %61 = arith.mulf %60, %31 : vector<16x16xf32>
    %62 = arith.addf %59, %61 : vector<16x16xf32>
    %cst_25 = arith.constant 1.19241583 : f32
    %63 = vector.broadcast %cst_25 : f32 to vector<16x16xf32>
    %64 = arith.mulf %63, %41 : vector<16x16xf32>
    %65 = arith.addf %62, %64 : vector<16x16xf32>
    %c1_i32_26 = arith.constant 1 : i32
    %66 = vector.broadcast %c1_i32_26 : i32 to vector<16x16xi32>
    %67 = arith.cmpi sge, %22, %66 : vector<16x16xi32>
    %c1_i32_27 = arith.constant 1 : i32
    %68 = tpu.dynamic_rotate %49 by %c1_i32_27 dim 0 : vector<16x16xf32>, i32 -> vector<16x16xf32>
    %cst_28 = arith.constant 0.000000e+00 : f32
    %69 = vector.broadcast %cst_28 : f32 to vector<16x16xf32>
    %70 = arith.select %67, %68, %69 : vector<16x16xi1>, vector<16x16xf32>
    %c15_i32_29 = arith.constant 15 : i32
    %71 = vector.broadcast %c15_i32_29 : i32 to vector<16x16xi32>
    %72 = arith.cmpi slt, %22, %71 : vector<16x16xi32>
    %c15_i32_30 = arith.constant 15 : i32
    %73 = tpu.dynamic_rotate %65 by %c15_i32_30 dim 0 : vector<16x16xf32>, i32 -> vector<16x16xf32>
    %cst_31 = arith.constant 0.000000e+00 : f32
    %74 = vector.broadcast %cst_31 : f32 to vector<16x16xf32>
    %75 = arith.select %72, %73, %74 : vector<16x16xi1>, vector<16x16xf32>
    %76 = arith.addf %70, %57 : vector<16x16xf32>
    %77 = arith.addf %76, %75 : vector<16x16xf32>
    %cst_32 = arith.constant 1.1359936 : f32
    %78 = vector.broadcast %cst_32 : f32 to vector<16x16xf32>
    %79 = arith.mulf %78, %77 : vector<16x16xf32>
    %cst_33 = arith.constant -0.0904288664 : f32
    %80 = vector.broadcast %cst_33 : f32 to vector<16x16xf32>
    %81 = arith.addf %79, %80 : vector<16x16xf32>
    %cst_34 = arith.constant 0.865137994 : f32
    %82 = vector.broadcast %cst_34 : f32 to vector<16x16xf32>
    %83 = arith.mulf %82, %5 : vector<16x16xf32>
    %cst_35 = arith.constant 0.0514418632 : f32
    %84 = vector.broadcast %cst_35 : f32 to vector<16x16xf32>
    %85 = arith.addf %83, %84 : vector<16x16xf32>
    %86 = arith.addf %27, %81 : vector<16x16xf32>
    %87 = arith.addf %86, %85 : vector<16x16xf32>
    %cst_36 = arith.constant 0.000000e+00 : f32
    %88 = vector.broadcast %cst_36 : f32 to vector<16x16xf32>
    %89 = arith.maximumf %87, %88 : vector<16x16xf32>
    %cst_37 = arith.constant 0.134245291 : f32
    %90 = vector.broadcast %cst_37 : f32 to vector<16x16xf32>
    %91 = arith.mulf %90, %89 : vector<16x16xf32>
    %cst_38 = arith.constant -0.142303303 : f32
    %92 = vector.broadcast %cst_38 : f32 to vector<16x16xf32>
    %93 = arith.addf %91, %92 : vector<16x16xf32>
    %cst_39 = arith.constant -0.746191859 : f32
    %94 = vector.broadcast %cst_39 : f32 to vector<16x16xf32>
    %95 = arith.mulf %94, %89 : vector<16x16xf32>
    %cst_40 = arith.constant -0.138205558 : f32
    %96 = vector.broadcast %cst_40 : f32 to vector<16x16xf32>
    %97 = arith.addf %95, %96 : vector<16x16xf32>
    %c1_i32_41 = arith.constant 1 : i32
    %98 = vector.broadcast %c1_i32_41 : i32 to vector<16x16xi32>
    %99 = arith.cmpi sge, %23, %98 : vector<16x16xi32>
    %c1_i32_42 = arith.constant 1 : i32
    %100 = tpu.dynamic_rotate %97 by %c1_i32_42 dim 1 : vector<16x16xf32>, i32 -> vector<16x16xf32>
    %cst_43 = arith.constant 0.000000e+00 : f32
    %101 = vector.broadcast %cst_43 : f32 to vector<16x16xf32>
    %102 = arith.select %99, %100, %101 : vector<16x16xi1>, vector<16x16xf32>
    %c15_i32_44 = arith.constant 15 : i32
    %103 = vector.broadcast %c15_i32_44 : i32 to vector<16x16xi32>
    %104 = arith.cmpi slt, %23, %103 : vector<16x16xi32>
    %c15_i32_45 = arith.constant 15 : i32
    %105 = tpu.dynamic_rotate %97 by %c15_i32_45 dim 1 : vector<16x16xf32>, i32 -> vector<16x16xf32>
    %cst_46 = arith.constant 0.000000e+00 : f32
    %106 = vector.broadcast %cst_46 : f32 to vector<16x16xf32>
    %107 = arith.select %104, %105, %106 : vector<16x16xi1>, vector<16x16xf32>
    %cst_47 = arith.constant 0.0222235266 : f32
    %108 = vector.broadcast %cst_47 : f32 to vector<16x16xf32>
    %109 = arith.mulf %108, %102 : vector<16x16xf32>
    %cst_48 = arith.constant 0.999315559 : f32
    %110 = vector.broadcast %cst_48 : f32 to vector<16x16xf32>
    %111 = arith.mulf %110, %97 : vector<16x16xf32>
    %112 = arith.addf %109, %111 : vector<16x16xf32>
    %cst_49 = arith.constant -0.364667296 : f32
    %113 = vector.broadcast %cst_49 : f32 to vector<16x16xf32>
    %114 = arith.mulf %113, %107 : vector<16x16xf32>
    %115 = arith.addf %112, %114 : vector<16x16xf32>
    %cst_50 = arith.constant 0.165895626 : f32
    %116 = vector.broadcast %cst_50 : f32 to vector<16x16xf32>
    %117 = arith.mulf %116, %102 : vector<16x16xf32>
    %cst_51 = arith.constant 0.433839351 : f32
    %118 = vector.broadcast %cst_51 : f32 to vector<16x16xf32>
    %119 = arith.mulf %118, %97 : vector<16x16xf32>
    %120 = arith.addf %117, %119 : vector<16x16xf32>
    %cst_52 = arith.constant 0.495045692 : f32
    %121 = vector.broadcast %cst_52 : f32 to vector<16x16xf32>
    %122 = arith.mulf %121, %107 : vector<16x16xf32>
    %123 = arith.addf %120, %122 : vector<16x16xf32>
    %cst_53 = arith.constant 0.560174167 : f32
    %124 = vector.broadcast %cst_53 : f32 to vector<16x16xf32>
    %125 = arith.mulf %124, %102 : vector<16x16xf32>
    %cst_54 = arith.constant -0.336616546 : f32
    %126 = vector.broadcast %cst_54 : f32 to vector<16x16xf32>
    %127 = arith.mulf %126, %97 : vector<16x16xf32>
    %128 = arith.addf %125, %127 : vector<16x16xf32>
    %cst_55 = arith.constant 0.407338113 : f32
    %129 = vector.broadcast %cst_55 : f32 to vector<16x16xf32>
    %130 = arith.mulf %129, %107 : vector<16x16xf32>
    %131 = arith.addf %128, %130 : vector<16x16xf32>
    %c1_i32_56 = arith.constant 1 : i32
    %132 = vector.broadcast %c1_i32_56 : i32 to vector<16x16xi32>
    %133 = arith.cmpi sge, %22, %132 : vector<16x16xi32>
    %c1_i32_57 = arith.constant 1 : i32
    %134 = tpu.dynamic_rotate %115 by %c1_i32_57 dim 0 : vector<16x16xf32>, i32 -> vector<16x16xf32>
    %cst_58 = arith.constant 0.000000e+00 : f32
    %135 = vector.broadcast %cst_58 : f32 to vector<16x16xf32>
    %136 = arith.select %133, %134, %135 : vector<16x16xi1>, vector<16x16xf32>
    %c15_i32_59 = arith.constant 15 : i32
    %137 = vector.broadcast %c15_i32_59 : i32 to vector<16x16xi32>
    %138 = arith.cmpi slt, %22, %137 : vector<16x16xi32>
    %c15_i32_60 = arith.constant 15 : i32
    %139 = tpu.dynamic_rotate %131 by %c15_i32_60 dim 0 : vector<16x16xf32>, i32 -> vector<16x16xf32>
    %cst_61 = arith.constant 0.000000e+00 : f32
    %140 = vector.broadcast %cst_61 : f32 to vector<16x16xf32>
    %141 = arith.select %138, %139, %140 : vector<16x16xi1>, vector<16x16xf32>
    %142 = arith.addf %136, %123 : vector<16x16xf32>
    %143 = arith.addf %142, %141 : vector<16x16xf32>
    %cst_62 = arith.constant 0.99201864 : f32
    %144 = vector.broadcast %cst_62 : f32 to vector<16x16xf32>
    %145 = arith.mulf %144, %143 : vector<16x16xf32>
    %cst_63 = arith.constant -0.183195844 : f32
    %146 = vector.broadcast %cst_63 : f32 to vector<16x16xf32>
    %147 = arith.addf %145, %146 : vector<16x16xf32>
    %cst_64 = arith.constant 0.865137994 : f32
    %148 = vector.broadcast %cst_64 : f32 to vector<16x16xf32>
    %149 = arith.mulf %148, %89 : vector<16x16xf32>
    %cst_65 = arith.constant 0.0514418632 : f32
    %150 = vector.broadcast %cst_65 : f32 to vector<16x16xf32>
    %151 = arith.addf %149, %150 : vector<16x16xf32>
    %152 = arith.addf %93, %147 : vector<16x16xf32>
    %153 = arith.addf %152, %151 : vector<16x16xf32>
    %154 = arith.negf %153 : vector<16x16xf32>
    %155 = math.exp %154 : vector<16x16xf32>
    %cst_66 = arith.constant 1.000000e+00 : f32
    %156 = vector.broadcast %cst_66 : f32 to vector<16x16xf32>
    %157 = arith.addf %156, %155 : vector<16x16xf32>
    %158 = arith.divf %156, %157 : vector<16x16xf32>
    %cst_67 = arith.constant dense<0.000000e+00> : vector<16x512xf32>
    %159 = tpu.matmul %158, %2, %cst_67 {dimension_numbers = #tpu.dot_dimension_numbers<[1], [0], [0], [1], [0, 0, 1, 1], [], []>} : vector<16x16xf32>, vector<16x512xf32>, vector<16x512xf32> -> vector<16x512xf32>
    %cst_68 = arith.constant 1.000000e+00 : f32
    %160 = vector.broadcast %cst_68 : f32 to vector<16x512xf32>
    %161 = arith.addf %160, %159 : vector<16x512xf32>
    %162 = arith.mulf %1, %161 : vector<16x512xf32>
    %163 = vector.shape_cast %162 : vector<16x512xf32> to vector<1x16x512xf32>
    %c0_69 = arith.constant 0 : index
    %c0_70 = arith.constant 0 : index
    %c0_71 = arith.constant 0 : index
    %164 = vector.load %arg3[%c0_69, %c0_70, %c0_71] : memref<1x16x512xf32, #tpu.memory_space<vmem>>, vector<1x16x512xf32>
    tpu.vector_store %arg3[%c0_69, %c0_70, %c0_71], %163 {strides = array<i32>} : memref<1x16x512xf32, #tpu.memory_space<vmem>>, vector<1x16x512xf32>,
    return
  }
  func.func @transform_0(%arg0: i32) -> (i32, i32, i32) {
    %c0_i32 = arith.constant 0 : i32
    %c0_i32_0 = arith.constant 0 : i32
    %c0_i32_1 = arith.constant 0 : i32
    return %arg0, %c0_i32, %c0_i32_0 : i32, i32, i32
  }
  func.func @transform_1(%arg0: i32) -> (i32, i32) {
    %c0_i32 = arith.constant 0 : i32
    %c0_i32_0 = arith.constant 0 : i32
    %c0_i32_1 = arith.constant 0 : i32
    return %c0_i32, %c0_i32_0 : i32, i32
  }
  func.func @transform_2(%arg0: i32) -> (i32, i32, i32) {
    %c0_i32 = arith.constant 0 : i32
    %c0_i32_0 = arith.constant 0 : i32
    %c0_i32_1 = arith.constant 0 : i32
    return %arg0, %c0_i32, %c0_i32_0 : i32, i32, i32
  }
}

</mosaic_0001>

<llo_original>
// kernel: tpu_custom_call.1
$region0: #{tpu_custom_call.1}
  #allocation0 [shape = 'u32[]', space=smem, size = 0x4, offset = 0x4, fixed_abs, tag = 'smem constant byte address 0x4 - core index']
  #allocation1 [shape = 'u32[144,128]{1,0:T(1,128)}', space=vmem, size = 0x12000, scoped, tag = 'internal scratch']
  %s0 = inlined_call_operand.hbm [shape: f32[2,16,512], index: 0, kind: input, shape index: {}, may-alias: {0,2}]
  %s1 = inlined_call_operand.vmem [shape: f32[16,512], index: 1, kind: input, shape index: {}]
  %s2 = inlined_call_operand.hbm [shape: f32[2,16,512], index: 2, kind: output, shape index: {}, may-alias: {0,2}]
  %s3 = sld [smem:[#allocation0]]
  $region45: #{tpu_custom_call.1} parent=0
    _
  %s5 = ssub.s32 1, %s3
  %s6 = scalar_select 0, %s5, %s3
  $region1: #{tpu_custom_call.1} parent=0
    #allocation2 [shape = 'u8[65536]{0}', space=vmem, size = 0x10000, scoped, tag = 'input window, operand 0']
    #allocation3 [shape = 's32[2]{0}', space=sflag, size = 0x8, scoped, tag = 'scoped memory for tpu_custom_call.1']
    #allocation4 [shape = 's32[2]{0}', space=sflag, size = 0x8, scoped, tag = 'scoped memory for tpu_custom_call.1']
    #allocation5 [shape = 'u8[65536]{0}', space=vmem, size = 0x10000, scoped, tag = 'output window, operand 0']
    %7 = vsyncpa [#allocation3], 0
    %s8 = scalar_lea.sflag [#allocation3], 1
    %9 = vsyncpa %s8, 0
    %10 = vsyncpa [#allocation4], 0
    %s11 = scalar_lea.sflag [#allocation4], 1
    %12 = vsyncpa %s11, 0
    loop: start=0, step=1, limit=4
    $region2: #{tpu_custom_call.1} parent=1 // loop_pre_header
      _
    $region3: #{tpu_custom_call.1} parent=1 // loop_header
      %s14 = sphi 0, %s18
      %p15 = scmp.ge.s32.totalorder %s14, 4
      %s24 = sphi 0, %s26
      %s27 = sphi 0, %s24
      %s28 = sphi 0, %s27
      %s44 = sphi 0, %s28
      %s48 = sphi 0, %s48
      %s50 = sphi 0, %s48
      %s51 = sphi 0, %s50
      %s65 = sphi 0, %s51
      %s71 = sphi 0, %s73
      %s74 = sphi 0, %s71
      %s75 = sphi 0, %s74
      %s91 = sphi 0, %s75
    $region4: #{tpu_custom_call.1} parent=1 // loop_header_branch
      %17 = sbr.rel (%p15) target = $region8
    $region5: #{tpu_custom_call.1} parent=1 // loop_body
      %s19 = ssub.s32 %s14, 1
      %s20 = ssub.s32 %s14, 2
      %s21 = sadd.s32 %s14, 1
      %s22 = ssub.s32 %s14, %s21
      %p23 = scmp.eq.s32.totalorder %s22, 0
      %s25 = sadd.s32 %s24, 1
      %s26 = scalar_select %p23, %s24, %s25
      %p29 = pneg %p23
      %p30 = scmp.eq.s32.totalorder %s14, 1
      %p31 = por %p29, %p30
      %p32 = scmp.ne.s32.totalorder %s24, %s27
      %p33 = scmp.eq.s32.totalorder %s14, 0
      %p34 = por %p32, %p33
      %p35 = scmp.ne.s32.totalorder %s24, %s27
      %p36 = scmp.eq.s32.totalorder %s19, 1
      %p37 = por %p35, %p36
      %p38 = scmp.ne.s32.totalorder %s27, %s28
      %p39 = scmp.eq.s32.totalorder %s19, 0
      %p40 = por %p38, %p39
      %p41 = scmp.ne.s32.totalorder %s27, %s28
      %p42 = scmp.eq.s32.totalorder %s20, 1
      %p43 = por %p41, %p42
      %p45 = scmp.ne.s32.totalorder %s28, %s44
      %p46 = scmp.eq.s32.totalorder %s20, 0
      %p47 = por %p45, %p46
      %s49 = sadd.s32 %s48, 1
      %p52 = scmp.eq.s32.totalorder %s14, 1
      %p53 = scmp.ne.s32.totalorder %s48, %s50
      %p54 = scmp.eq.s32.totalorder %s14, 0
      %p55 = por %p53, %p54
      %p56 = scmp.ne.s32.totalorder %s48, %s50
      %p57 = scmp.eq.s32.totalorder %s19, 1
      %p58 = por %p56, %p57
      %p59 = scmp.ne.s32.totalorder %s50, %s51
      %p60 = scmp.eq.s32.totalorder %s19, 0
      %p61 = por %p59, %p60
      %p62 = scmp.ne.s32.totalorder %s50, %s51
      %p63 = scmp.eq.s32.totalorder %s20, 1
      %p64 = por %p62, %p63
      %p66 = scmp.ne.s32.totalorder %s51, %s65
      %p67 = scmp.eq.s32.totalorder %s20, 0
      %p68 = por %p66, %p67
      %s69 = ssub.s32 %s14, %s21
      %p70 = scmp.eq.s32.totalorder %s69, 0
      %s72 = sadd.s32 %s71, 1
      %s73 = scalar_select %p70, %s71, %s72
      %p76 = pneg %p70
      %p77 = scmp.eq.s32.totalorder %s14, 1
      %p78 = por %p76, %p77
      %p79 = scmp.ne.s32.totalorder %s71, %s74
      %p80 = scmp.eq.s32.totalorder %s14, 0
      %p81 = por %p79, %p80
      %p82 = scmp.ne.s32.totalorder %s71, %s74
      %p83 = scmp.eq.s32.totalorder %s19, 1
      %p84 = por %p82, %p83
      %p85 = scmp.ne.s32.totalorder %s74, %s75
      %p86 = scmp.eq.s32.totalorder %s19, 0
      %p87 = por %p85, %p86
      %p88 = scmp.ne.s32.totalorder %s74, %s75
      %p89 = scmp.eq.s32.totalorder %s20, 1
      %p90 = por %p88, %p89
      %p92 = scmp.ne.s32.totalorder %s75, %s91
      %p93 = scmp.eq.s32.totalorder %s20, 0
      %p94 = por %p92, %p93
      %p95 = scmp.le.s32.totalorder 1, %s14
      %p96 = scmp.lt.s32.totalorder %s14, 3
      %p97 = pnand %p95, %p96
      %p98 = pneg %p97
      // Predicated region
      $region9: #{tpu_custom_call.1} parent=5 // pred_check
        _
      $region10: #{tpu_custom_call.1} parent=5 // pred_check_branch
        %100 = sbr.rel (%p97) target = $region12
      $region11: #{tpu_custom_call.1} parent=5 // pred_region
        %s101 = ssub.s32 %s14, 1
        // Predicated region
        $region13: #{tpu_custom_call.1} parent=11 // pred_check
          %p102 = pneg %p61
        $region14: #{tpu_custom_call.1} parent=11 // pred_check_branch
          %104 = sbr.rel (%p102) target = $region16
        $region15: #{tpu_custom_call.1} parent=11 // pred_region
          _
        $region16: #{tpu_custom_call.1} parent=11 // pred_fallthru
          _
      $region12: #{tpu_custom_call.1} parent=5 // pred_fallthru
        _
      %p105 = scmp.lt.s32.totalorder %s14, 2
      // Predicated region
      $region17: #{tpu_custom_call.1} parent=5 // pred_check
        %p106 = pneg %p105
      $region18: #{tpu_custom_call.1} parent=5 // pred_check_branch
        %108 = sbr.rel (%p106) target = $region20
      $region19: #{tpu_custom_call.1} parent=5 // pred_region
        // Predicated region
        $region21: #{tpu_custom_call.1} parent=19 // pred_check
          %p109 = pneg %p34
        $region22: #{tpu_custom_call.1} parent=19 // pred_check_branch
          %111 = sbr.rel (%p109) target = $region24
        $region23: #{tpu_custom_call.1} parent=19 // pred_region
          %s112 = sand.u32 %s24, 1
          %s113 = scalar_lea.sflag [#allocation3], %s112
          %s114 = sand.u32 %s24, 1
          %s115 = smul.addr %s114, 64
          %s116 = scalar_lea.vmem [#allocation2], %s115
          %s118 = ssub.s32 1024, 1024
          %119 = vsyncadd %s113, %s118
          %s120 = smul.addr %s14, 8
          %s121 = smul.addr %s120, 128
          %s122 = scalar_lea.hbm %s0, %s121
          %s123 = sshll.u32 %s116, 4
          %s124 = int_to_ptr.vmem [resolvable:$true] %s123
          %129 = dma.hbm_to_vmem [thread:$0]  %s122, 1024, %s124, %s113, 512, 512, 32
        $region24: #{tpu_custom_call.1} parent=19 // pred_fallthru
          _
      $region20: #{tpu_custom_call.1} parent=5 // pred_fallthru
        _
      %p130 = scmp.le.s32.totalorder 1, %s14
      %p131 = scmp.lt.s32.totalorder %s14, 3
      %p132 = pnand %p130, %p131
      %p133 = pneg %p132
      // Predicated region
      $region25: #{tpu_custom_call.1} parent=5 // pred_check
        _
      $region26: #{tpu_custom_call.1} parent=5 // pred_check_branch
        %135 = sbr.rel (%p132) target = $region28
      $region27: #{tpu_custom_call.1} parent=5 // pred_region
        %s136 = ssub.s32 %s14, 1
        %s137 = sand.u32 %s27, 1
        %s138 = scalar_lea.sflag [#allocation3], %s137
        %s139 = sand.u32 %s27, 1
        %s140 = smul.addr %s139, 64
        %s141 = scalar_lea.vmem [#allocation2], %s140
        // Predicated region
        $region29: #{tpu_custom_call.1} parent=27 // pred_check
          %p142 = pneg %p40
        $region30: #{tpu_custom_call.1} parent=27 // pred_check_branch
          %144 = sbr.rel (%p142) target = $region32
        $region31: #{tpu_custom_call.1} parent=27 // pred_region
          %145 = dma.done %s138, 1024
        $region32: #{tpu_custom_call.1} parent=27 // pred_fallthru
          _
        %s146 = sand.u32 %s27, 1
        %s147 = scalar_lea.sflag [#allocation3], %s146
        %s148 = sand.u32 %s27, 1
        %s149 = smul.addr %s148, 64
        %s150 = scalar_lea.vmem [#allocation2], %s149
        %p151 = pneg %p40
        %p152 = pneg %p37
        %p153 = pneg %p61
        %p154 = pneg %p58
        %p155 = pneg %p87
        %p156 = pneg %p84
        %s157 = sand.u32 %s74, 1
        %s158 = scalar_lea.sflag [#allocation4], %s157
        %s159 = sand.u32 %s74, 1
        %s160 = smul.addr %s159, 64
        %s161 = scalar_lea.vmem [#allocation5], %s160
        %v162 = vld [vmem:[%s141] sm:$0xff]
        %v163 = vld [vmem:[%s141 + $0x8] sm:$0xff]
        %v164 = vld [vmem:[%s141 + $0x10] sm:$0xff]
        %v165 = vld [vmem:[%s141 + $0x18] sm:$0xff]
        %v166 = vld [vmem:[%s141 + $0x20] sm:$0xff]
        %v167 = vld [vmem:[%s141 + $0x28] sm:$0xff]
        %v168 = vld [vmem:[%s141 + $0x30] sm:$0xff]
        %v169 = vld [vmem:[%s141 + $0x38] sm:$0xff]
        %v170 = vld [vmem:[%s1] sm:$0xff]
        %v171 = vld [vmem:[%s1 + $0x8] sm:$0xff]
        %v172 = vld [vmem:[%s1 + $0x10] sm:$0xff]
        %v173 = vld [vmem:[%s1 + $0x18] sm:$0xff]
        %v174 = vld [vmem:[%s1 + $0x20] sm:$0xff]
        %v175 = vld [vmem:[%s1 + $0x28] sm:$0xff]
        %v176 = vld [vmem:[%s1 + $0x30] sm:$0xff]
        %v177 = vld [vmem:[%s1 + $0x38] sm:$0xff]
        %178 = vmatprep.subr.mxu0 %v171
        %179 = vmatpush1.xpose.msra.mxu0 %v170
        %180 = vmatprep.subr.mxu0 %v175
        %181 = vmatpush1.xpose.msra.mxu0 %v174
        %182 = vmatprep.subr.mxu0 0.0
        %183 = vmatpush1.xpose.msra.mxu0 0.0
        %184 = vmatprep.subr.mxu0 0.0
        %185 = vmatpush1.xpose.msra.mxu0 0.0
        %186 = vmatprep.subr.mxu0 0.0
        %187 = vmatpush1.xpose.msra.mxu0 0.0
        %188 = vmatprep.subr.mxu0 0.0
        %189 = vmatpush1.xpose.msra.mxu0 0.0
        %190 = vmatprep.subr.mxu0 0.0
        %191 = vmatpush1.xpose.msra.mxu0 0.0
        %192 = vmatprep.subr.mxu0 0.0
        %193 = vmatpush1.xpose.msra.mxu0 0.0
        %194 = vmatprep.subr.mxu0 0.0
        %195 = vmatpush1.xpose.msra.mxu0 0.0
        %196 = vmatprep.subr.mxu0 0.0
        %197 = vmatpush1.xpose.msra.mxu0 0.0
        %198 = vmatprep.subr.mxu0 0.0
        %199 = vmatpush1.xpose.msra.mxu0 0.0
        %200 = vmatprep.subr.mxu0 0.0
        %201 = vmatpush1.xpose.msra.mxu0 0.0
        %202 = vmatprep.subr.mxu0 0.0
        %203 = vmatpush1.xpose.msra.mxu0 0.0
        %204 = vmatprep.subr.mxu0 0.0
        %205 = vmatpush1.xpose.msra.mxu0 0.0
        %206 = vmatprep.subr.mxu0 0.0
        %207 = vmatpush1.xpose.msra.mxu0 0.0
        %208 = vmatprep.subr.mxu0 0.0
        %209 = vmatpush1.xpose.msra.mxu0 0.0
        %210 = vmatprep.subr.mxu0 0.0
        %211 = vmatpush1.xpose.msra.mxu0 0.0
        %212 = vmatprep.subr.mxu0 0.0
        %213 = vmatpush1.xpose.msra.mxu0 0.0
        %214 = vmatprep.subr.mxu0 0.0
        %215 = vmatpush1.xpose.msra.mxu0 0.0
        %216 = vmatprep.subr.mxu0 0.0
        %217 = vmatpush1.xpose.msra.mxu0 0.0
        %218 = vmatprep.subr.mxu0 0.0
        %219 = vmatpush1.xpose.msra.mxu0 0.0
        %220 = vmatprep.subr.mxu0 0.0
        %221 = vmatpush1.xpose.msra.mxu0 0.0
        %222 = vmatprep.subr.mxu0 0.0
        %223 = vmatpush1.xpose.msra.mxu0 0.0
        %224 = vmatprep.subr.mxu0 0.0
        %225 = vmatpush1.xpose.msra.mxu0 0.0
        %226 = vmatprep.subr.mxu0 0.0
        %227 = vmatpush1.xpose.msra.mxu0 0.0
        %228 = vmatprep.subr.mxu0 0.0
        %229 = vmatpush1.xpose.msra.mxu0 0.0
        %230 = vmatprep.subr.mxu0 0.0
        %231 = vmatpush1.xpose.msra.mxu0 0.0
        %232 = vmatprep.subr.mxu0 0.0
        %233 = vmatpush1.xpose.msra.mxu0 0.0
        %234 = vmatprep.subr.mxu0 0.0
        %235 = vmatpush1.xpose.msra.mxu0 0.0
        %236 = vmatprep.subr.mxu0 0.0
        %237 = vmatpush1.xpose.msra.mxu0 0.0
        %238 = vmatprep.subr.mxu0 0.0
        %239 = vmatpush1.xpose.msra.mxu0 0.0
        %240 = vmatprep.subr.mxu0 0.0
        %241 = vmatpush1.xpose.msra.mxu0 0.0
        %242 = vmatprep.mubr.f32.mxu0 %v163
        %243 = vmatmul.mubr.f32.gmra.mrb[0].mxu0 %v162
        %v244 = vpop.f32.mrb[0].mxu0
        %v245 = vadd.f32 0.0, %v244
        %v246 = vpop.f32.mrb[0].mxu0
        %247 = vmatprep.mubr.f32.mxu0 %v167
        %248 = vmatmul.mubr.f32.gmra.mrb[0].mxu0 %v166
        %v249 = vpop.f32.mrb[0].mxu0
        %v250 = vadd.f32 0.0, %v249
        %v251 = vpop.f32.mrb[0].mxu0
        %252 = vdwg.mxu0
        %253 = vmatprep.subr.mxu0 %v173
        %254 = vmatpush1.xpose.msra.mxu0 %v172
        %255 = vmatprep.subr.mxu0 %v177
        %256 = vmatpush1.xpose.msra.mxu0 %v176
        %257 = vmatprep.subr.mxu0 0.0
        %258 = vmatpush1.xpose.msra.mxu0 0.0
        %259 = vmatprep.subr.mxu0 0.0
        %260 = vmatpush1.xpose.msra.mxu0 0.0
        %261 = vmatprep.subr.mxu0 0.0
        %262 = vmatpush1.xpose.msra.mxu0 0.0
        %263 = vmatprep.subr.mxu0 0.0
        %264 = vmatpush1.xpose.msra.mxu0 0.0
        %265 = vmatprep.subr.mxu0 0.0
        %266 = vmatpush1.xpose.msra.mxu0 0.0
        %267 = vmatprep.subr.mxu0 0.0
        %268 = vmatpush1.xpose.msra.mxu0 0.0
        %269 = vmatprep.subr.mxu0 0.0
        %270 = vmatpush1.xpose.msra.mxu0 0.0
        %271 = vmatprep.subr.mxu0 0.0
        %272 = vmatpush1.xpose.msra.mxu0 0.0
        %273 = vmatprep.subr.mxu0 0.0
        %274 = vmatpush1.xpose.msra.mxu0 0.0
        %275 = vmatprep.subr.mxu0 0.0
        %276 = vmatpush1.xpose.msra.mxu0 0.0
        %277 = vmatprep.subr.mxu0 0.0
        %278 = vmatpush1.xpose.msra.mxu0 0.0
        %279 = vmatprep.subr.mxu0 0.0
        %280 = vmatpush1.xpose.msra.mxu0 0.0
        %281 = vmatprep.subr.mxu0 0.0
        %282 = vmatpush1.xpose.msra.mxu0 0.0
        %283 = vmatprep.subr.mxu0 0.0
        %284 = vmatpush1.xpose.msra.mxu0 0.0
        %285 = vmatprep.subr.mxu0 0.0
        %286 = vmatpush1.xpose.msra.mxu0 0.0
        %287 = vmatprep.subr.mxu0 0.0
        %288 = vmatpush1.xpose.msra.mxu0 0.0
        %289 = vmatprep.subr.mxu0 0.0
        %290 = vmatpush1.xpose.msra.mxu0 0.0
        %291 = vmatprep.subr.mxu0 0.0
        %292 = vmatpush1.xpose.msra.mxu0 0.0
        %293 = vmatprep.subr.mxu0 0.0
        %294 = vmatpush1.xpose.msra.mxu0 0.0
        %295 = vmatprep.subr.mxu0 0.0
        %296 = vmatpush1.xpose.msra.mxu0 0.0
        %297 = vmatprep.subr.mxu0 0.0
        %298 = vmatpush1.xpose.msra.mxu0 0.0
        %299 = vmatprep.subr.mxu0 0.0
        %300 = vmatpush1.xpose.msra.mxu0 0.0
        %301 = vmatprep.subr.mxu0 0.0
        %302 = vmatpush1.xpose.msra.mxu0 0.0
        %303 = vmatprep.subr.mxu0 0.0
        %304 = vmatpush1.xpose.msra.mxu0 0.0
        %305 = vmatprep.subr.mxu0 0.0
        %306 = vmatpush1.xpose.msra.mxu0 0.0
        %307 = vmatprep.subr.mxu0 0.0
        %308 = vmatpush1.xpose.msra.mxu0 0.0
        %309 = vmatprep.subr.mxu0 0.0
        %310 = vmatpush1.xpose.msra.mxu0 0.0
        %311 = vmatprep.subr.mxu0 0.0
        %312 = vmatpush1.xpose.msra.mxu0 0.0
        %313 = vmatprep.subr.mxu0 0.0
        %314 = vmatpush1.xpose.msra.mxu0 0.0
        %315 = vmatprep.subr.mxu0 0.0
        %316 = vmatpush1.xpose.msra.mxu0 0.0
        %317 = vmatprep.mubr.f32.mxu0 %v165
        %318 = vmatmul.mubr.f32.gmra.mrb[0].mxu0 %v164
        %v319 = vpop.f32.mrb[0].mxu0
        %v320 = vadd.f32 %v245, %v319
        %v321 = vpop.f32.mrb[0].mxu0
        %322 = vmatprep.mubr.f32.mxu0 %v169
        %323 = vmatmul.mubr.f32.gmra.mrb[0].mxu0 %v168
        %v324 = vpop.f32.mrb[0].mxu0
        %v325 = vadd.f32 %v250, %v324
        %v326 = vpop.f32.mrb[0].mxu0
        %327 = vdwg.mxu0
        %v328 = vmul.f32 %v320, 0.03125
        %v329 = vmul.f32 %v325, 0.03125
        %v330 = vlaneseq
        %v331 = vshrl.u32 %v330, 7
        %v332 = vadd.s32 %v331, 8
        %vm333 = vcmp.lt.s32.totalorder %v331, 0
        %v334 = vsub.s32 0, %v331
        %v335 = vsel %vm333, %v334, %v331
        %v336 = vshrl.u32 %v335, 4
        %v337 = vand.u32 %v335, 15
        %v338 = vsub.s32 0, %v337
        %v339 = vsel %vm333, %v338, %v337
        %vm340 = vcmp.lt.s32.totalorder %v332, 0
        %v341 = vsub.s32 0, %v332
        %v342 = vsel %vm340, %v341, %v332
        %v343 = vshrl.u32 %v342, 4
        %v344 = vand.u32 %v342, 15
        %v345 = vsub.s32 0, %v344
        %v346 = vsel %vm340, %v345, %v344
        %vm347 = vcmp.ne.s32.totalorder %v339, 0
        %vm348 = vcmp.ne.s32.totalorder %v346, 0
        %vm349 = vcmp.lt.s32.totalorder %v339, 0
        %vm350 = vcmp.lt.s32.totalorder %v346, 0
        %vm351 = vmand %vm349, %vm347
        %vm352 = vmand %vm350, %vm348
        %v353 = vadd.s32 %v339, 16
        %v354 = vadd.s32 %v346, 16
        %v355 = vsel %vm351, %v353, %v339
        %v356 = vsel %vm352, %v354, %v346
        %v357 = vlaneseq
        %v358 = vand.u32 %v357, 127
        %v359 = vmul.f32 %v328, 0.033062004
        %v360 = vmul.f32 %v329, 0.033062004
        %v361 = vadd.f32 %v359, -0.1892197
        %v362 = vadd.f32 %v360, -0.1892197
        %v363 = vmul.f32 %v328, 0.1935038
        %v364 = vmul.f32 %v329, 0.1935038
        %v365 = vadd.f32 %v363, -0.05843004
        %v366 = vadd.f32 %v364, -0.05843004
        %vm367 = vcmp.ge.s32.totalorder %v358, 1
        %vm368 = vcmask 1047680
        %369 = vrot.lane.b32.xlu0 %v365, 16
        %v370 = vpop.permute.xlu0 %369
        %v371 = vsel %vm368, %v370, %v365
        %372 = vrot.lane.b32.xlu0 %v366, 16
        %v373 = vpop.permute.xlu0 %372
        %v374 = vsel %vm368, %v373, %v366
        %375 = vrot.lane.b32.xlu0 %v371, 16
        %v376 = vpop.permute.xlu0 %375
        %377 = vrot.lane.b32.xlu0 %v374, 16
        %v378 = vpop.permute.xlu0 %377
        %v379 = vsel %vm368, %v376, %v365
        %v380 = vsel %vm368, %v378, %v366
        %383 = vrot.lane.b32.xlu0 %v379, 113
        %v384 = vpop.permute.xlu0 %383
        %385 = vrot.lane.b32.xlu0 %v380, 113
        %v386 = vpop.permute.xlu0 %385
        %v389 = vsel %vm367, %v384, 0.0
        %v390 = vsel %vm367, %v386, 0.0
        %vm391 = vcmp.lt.s32.totalorder %v358, 15
        %392 = vrot.lane.b32.xlu0 %v379, 127
        %v393 = vpop.permute.xlu0 %392
        %394 = vrot.lane.b32.xlu0 %v380, 127
        %v395 = vpop.permute.xlu0 %394
        %v398 = vsel %vm391, %v393, 0.0
        %v399 = vsel %vm391, %v395, 0.0
        %v400 = vmul.f32 %v389, 0.3274589
        %v401 = vmul.f32 %v390, 0.3274589
        %v402 = vmul.f32 %v365, 0.08672607
        %v403 = vmul.f32 %v366, 0.08672607
        %v404 = vadd.f32 %v400, %v402
        %v405 = vadd.f32 %v401, %v403
        %v406 = vmul.f32 %v398, 0.80092025
        %v407 = vmul.f32 %v399, 0.80092025
        %v408 = vadd.f32 %v404, %v406
        %v409 = vadd.f32 %v405, %v407
        %v410 = vmul.f32 %v389, 0.3865344
        %v411 = vmul.f32 %v390, 0.3865344
        %v412 = vmul.f32 %v365, 0.3760176
        %v413 = vmul.f32 %v366, 0.3760176
        %v414 = vadd.f32 %v410, %v412
        %v415 = vadd.f32 %v411, %v413
        %v416 = vmul.f32 %v398, 0.13508765
        %v417 = vmul.f32 %v399, 0.13508765
        %v418 = vadd.f32 %v414, %v416
        %v419 = vadd.f32 %v415, %v417
        %v420 = vmul.f32 %v389, 0.17418006
        %v421 = vmul.f32 %v390, 0.17418006
        %v422 = vmul.f32 %v365, -0.062226895
        %v423 = vmul.f32 %v366, -0.062226895
        %v424 = vadd.f32 %v420, %v422
        %v425 = vadd.f32 %v421, %v423
        %v426 = vmul.f32 %v398, 1.1924158
        %v427 = vmul.f32 %v399, 1.1924158
        %v428 = vadd.f32 %v424, %v426
        %v429 = vadd.f32 %v425, %v427
        %vm430 = vcmp.ge.s32.totalorder %v355, 1
        %vm431 = vcmp.ge.s32.totalorder %v356, 1
        %v432 = vrot.slane %v408, 7
        %v433 = vrot.slane %v409, 7
        %vm434 = vcmp.lt.s32.totalorder %v331, 1
        %v435 = vsel %vm434, %v432, %v433
        %v436 = vsel %vm434, %v433, %v432
        %v437 = vsel %vm430, %v436, 0.0
        %v438 = vsel %vm431, %v435, 0.0
        %vm439 = vcmp.lt.s32.totalorder %v355, 15
        %vm440 = vcmp.lt.s32.totalorder %v356, 15
        %v441 = vrot.slane %v428, 1
        %v442 = vrot.slane %v429, 1
        %vm443 = vcmp.lt.s32.totalorder %v331, 7
        %v444 = vsel %vm443, %v441, %v442
        %v445 = vsel %vm443, %v442, %v441
        %v446 = vsel %vm439, %v444, 0.0
        %v447 = vsel %vm440, %v445, 0.0
        %v448 = vadd.f32 %v437, %v418
        %v449 = vadd.f32 %v438, %v419
        %v450 = vadd.f32 %v448, %v446
        %v451 = vadd.f32 %v449, %v447
        %v452 = vmul.f32 %v450, 1.1359936
        %v453 = vmul.f32 %v451, 1.1359936
        %v454 = vadd.f32 %v452, -0.09042887
        %v455 = vadd.f32 %v453, -0.09042887
        %v456 = vmul.f32 %v328, 0.865138
        %v457 = vmul.f32 %v329, 0.865138
        %v458 = vadd.f32 %v456, 0.051441863
        %v459 = vadd.f32 %v457, 0.051441863
        %v460 = vadd.f32 %v361, %v454
        %v461 = vadd.f32 %v362, %v455
        %v462 = vadd.f32 %v460, %v458
        %v463 = vadd.f32 %v461, %v459
        %v464 = vmax.f32 %v462, 0.0
        %v465 = vmax.f32 %v463, 0.0
        %v466 = vmul.f32 %v464, 0.13424529
        %v467 = vmul.f32 %v465, 0.13424529
        %v468 = vadd.f32 %v466, -0.1423033
        %v469 = vadd.f32 %v467, -0.1423033
        %v470 = vmul.f32 %v464, -0.74619186
        %v471 = vmul.f32 %v465, -0.74619186
        %v472 = vadd.f32 %v470, -0.13820556
        %v473 = vadd.f32 %v471, -0.13820556
        %474 = vrot.lane.b32.xlu0 %v472, 16
        %v475 = vpop.permute.xlu0 %474
        %v476 = vsel %vm368, %v475, %v472
        %477 = vrot.lane.b32.xlu0 %v473, 16
        %v478 = vpop.permute.xlu0 %477
        %v479 = vsel %vm368, %v478, %v473
        %480 = vrot.lane.b32.xlu0 %v476, 16
        %v481 = vpop.permute.xlu0 %480
        %482 = vrot.lane.b32.xlu0 %v479, 16
        %v483 = vpop.permute.xlu0 %482
        %v484 = vsel %vm368, %v481, %v472
        %v485 = vsel %vm368, %v483, %v473
        %488 = vrot.lane.b32.xlu0 %v484, 113
        %v489 = vpop.permute.xlu0 %488
        %490 = vrot.lane.b32.xlu0 %v485, 113
        %v491 = vpop.permute.xlu0 %490
        %v494 = vsel %vm367, %v489, 0.0
        %v495 = vsel %vm367, %v491, 0.0
        %496 = vrot.lane.b32.xlu0 %v484, 127
        %v497 = vpop.permute.xlu0 %496
        %498 = vrot.lane.b32.xlu0 %v485, 127
        %v499 = vpop.permute.xlu0 %498
        %v502 = vsel %vm391, %v497, 0.0
        %v503 = vsel %vm391, %v499, 0.0
        %v504 = vmul.f32 %v494, 0.022223527
        %v505 = vmul.f32 %v495, 0.022223527
        %v506 = vmul.f32 %v472, 0.99931556
        %v507 = vmul.f32 %v473, 0.99931556
        %v508 = vadd.f32 %v504, %v506
        %v509 = vadd.f32 %v505, %v507
        %v510 = vmul.f32 %v502, -0.3646673
        %v511 = vmul.f32 %v503, -0.3646673
        %v512 = vadd.f32 %v508, %v510
        %v513 = vadd.f32 %v509, %v511
        %v514 = vmul.f32 %v494, 0.16589563
        %v515 = vmul.f32 %v495, 0.16589563
        %v516 = vmul.f32 %v472, 0.43383935
        %v517 = vmul.f32 %v473, 0.43383935
        %v518 = vadd.f32 %v514, %v516
        %v519 = vadd.f32 %v515, %v517
        %v520 = vmul.f32 %v502, 0.4950457
        %v521 = vmul.f32 %v503, 0.4950457
        %v522 = vadd.f32 %v518, %v520
        %v523 = vadd.f32 %v519, %v521
        %v524 = vmul.f32 %v494, 0.56017417
        %v525 = vmul.f32 %v495, 0.56017417
        %v526 = vmul.f32 %v472, -0.33661655
        %v527 = vmul.f32 %v473, -0.33661655
        %v528 = vadd.f32 %v524, %v526
        %v529 = vadd.f32 %v525, %v527
        %v530 = vmul.f32 %v502, 0.4073381
        %v531 = vmul.f32 %v503, 0.4073381
        %v532 = vadd.f32 %v528, %v530
        %v533 = vadd.f32 %v529, %v531
        %v534 = vrot.slane %v512, 7
        %v535 = vrot.slane %v513, 7
        %v536 = vsel %vm434, %v534, %v535
        %v537 = vsel %vm434, %v535, %v534
        %v538 = vsel %vm430, %v537, 0.0
        %v539 = vsel %vm431, %v536, 0.0
        %v540 = vrot.slane %v532, 1
        %v541 = vrot.slane %v533, 1
        %v542 = vsel %vm443, %v540, %v541
        %v543 = vsel %vm443, %v541, %v540
        %v544 = vsel %vm439, %v542, 0.0
        %v545 = vsel %vm440, %v543, 0.0
        %v546 = vadd.f32 %v538, %v522
        %v547 = vadd.f32 %v539, %v523
        %v548 = vadd.f32 %v546, %v544
        %v549 = vadd.f32 %v547, %v545
        %v550 = vmul.f32 %v548, 0.99201864
        %v551 = vmul.f32 %v549, 0.99201864
        %v552 = vadd.f32 %v550, -0.18319584
        %v553 = vadd.f32 %v551, -0.18319584
        %v554 = vmul.f32 %v464, 0.865138
        %v555 = vmul.f32 %v465, 0.865138
        %v556 = vadd.f32 %v554, 0.051441863
        %v557 = vadd.f32 %v555, 0.051441863
        %v558 = vadd.f32 %v468, %v552
        %v559 = vadd.f32 %v469, %v553
        %v560 = vadd.f32 %v558, %v556
        %v561 = vadd.f32 %v559, %v557
        %v562 = vxor.u32 %v560, 2147483648
        %v563 = vxor.u32 %v561, 2147483648
        %v564 = vmul.f32 %v562, 1.442695
        %v565 = vpow.pop %v564
        %v566 = vmul.f32 %v563, 1.442695
        %v567 = vpow.pop %v566
        %v568 = vadd.f32 %v565, 1.0
        %v569 = vadd.f32 %v567, 1.0
        %v570 = vrcp.pop %v568
        %v571 = vmul.f32 1.0, %v570
        %v572 = vrcp.pop %v569
        %v573 = vmul.f32 1.0, %v572
        %vm574 = vcmask 130048
        %v576 = vsel %vm574, %v571, 0
        %v579 = vsel %vm574, %v573, 0
        %581 = vmatprep.subr.mxu0 %v171
        %582 = vmatpush1.msra.mxu0 %v170
        %583 = vmatprep.subr.mxu0 %v175
        %584 = vmatpush1.msra.mxu0 %v174
        %585 = vmatprep.subr.mxu0 0.0
        %586 = vmatpush1.msra.mxu0 0.0
        %587 = vmatprep.subr.mxu0 0.0
        %588 = vmatpush1.msra.mxu0 0.0
        %589 = vmatprep.subr.mxu0 0.0
        %590 = vmatpush1.msra.mxu0 0.0
        %591 = vmatprep.subr.mxu0 0.0
        %592 = vmatpush1.msra.mxu0 0.0
        %593 = vmatprep.subr.mxu0 0.0
        %594 = vmatpush1.msra.mxu0 0.0
        %595 = vmatprep.subr.mxu0 0.0
        %596 = vmatpush1.msra.mxu0 0.0
        %597 = vmatprep.subr.mxu0 0.0
        %598 = vmatpush1.msra.mxu0 0.0
        %599 = vmatprep.subr.mxu0 0.0
        %600 = vmatpush1.msra.mxu0 0.0
        %601 = vmatprep.subr.mxu0 0.0
        %602 = vmatpush1.msra.mxu0 0.0
        %603 = vmatprep.subr.mxu0 0.0
        %604 = vmatpush1.msra.mxu0 0.0
        %605 = vmatprep.subr.mxu0 0.0
        %606 = vmatpush1.msra.mxu0 0.0
        %607 = vmatprep.subr.mxu0 0.0
        %608 = vmatpush1.msra.mxu0 0.0
        %609 = vmatprep.subr.mxu0 0.0
        %610 = vmatpush1.msra.mxu0 0.0
        %611 = vmatprep.subr.mxu0 0.0
        %612 = vmatpush1.msra.mxu0 0.0
        %613 = vmatprep.subr.mxu0 0.0
        %614 = vmatpush1.msra.mxu0 0.0
        %615 = vmatprep.subr.mxu0 0.0
        %616 = vmatpush1.msra.mxu0 0.0
        %617 = vmatprep.subr.mxu0 0.0
        %618 = vmatpush1.msra.mxu0 0.0
        %619 = vmatprep.subr.mxu0 0.0
        %620 = vmatpush1.msra.mxu0 0.0
        %621 = vmatprep.subr.mxu0 0.0
        %622 = vmatpush1.msra.mxu0 0.0
        %623 = vmatprep.subr.mxu0 0.0
        %624 = vmatpush1.msra.mxu0 0.0
        %625 = vmatprep.subr.mxu0 0.0
        %626 = vmatpush1.msra.mxu0 0.0
        %627 = vmatprep.subr.mxu0 0.0
        %628 = vmatpush1.msra.mxu0 0.0
        %629 = vmatprep.subr.mxu0 0.0
        %630 = vmatpush1.msra.mxu0 0.0
        %631 = vmatprep.subr.mxu0 0.0
        %632 = vmatpush1.msra.mxu0 0.0
        %633 = vmatprep.subr.mxu0 0.0
        %634 = vmatpush1.msra.mxu0 0.0
        %635 = vmatprep.subr.mxu0 0.0
        %636 = vmatpush1.msra.mxu0 0.0
        %637 = vmatprep.subr.mxu0 0.0
        %638 = vmatpush1.msra.mxu0 0.0
        %639 = vmatprep.subr.mxu0 0.0
        %640 = vmatpush1.msra.mxu0 0.0
        %641 = vmatprep.subr.mxu0 0.0
        %642 = vmatpush1.msra.mxu0 0.0
        %643 = vmatprep.subr.mxu0 0.0
        %644 = vmatpush1.msra.mxu0 0.0
        %645 = vmatprep.mubr.f32.mxu0 0.0
        %646 = vmatmul.mubr.f32.gmra.mrb[0].mxu0 %v576
        %v647 = vpop.f32.mrb[0].mxu0
        %v648 = vadd.f32 1.0, %v647
        %v649 = vpop.f32.mrb[0].mxu0
        %v650 = vadd.f32 1.0, %v649
        %651 = vmatprep.mubr.f32.mxu0 0.0
        %652 = vmatmul.mubr.f32.gmra.mrb[0].mxu0 %v579
        %v653 = vpop.f32.mrb[0].mxu0
        %v654 = vadd.f32 1.0, %v653
        %v655 = vpop.f32.mrb[0].mxu0
        %v656 = vadd.f32 1.0, %v655
        %657 = vdwg.mxu0
        %658 = vmatprep.subr.mxu0 %v173
        %659 = vmatpush1.msra.mxu0 %v172
        %660 = vmatprep.subr.mxu0 %v177
        %661 = vmatpush1.msra.mxu0 %v176
        %662 = vmatprep.subr.mxu0 0.0
        %663 = vmatpush1.msra.mxu0 0.0
        %664 = vmatprep.subr.mxu0 0.0
        %665 = vmatpush1.msra.mxu0 0.0
        %666 = vmatprep.subr.mxu0 0.0
        %667 = vmatpush1.msra.mxu0 0.0
        %668 = vmatprep.subr.mxu0 0.0
        %669 = vmatpush1.msra.mxu0 0.0
        %670 = vmatprep.subr.mxu0 0.0
        %671 = vmatpush1.msra.mxu0 0.0
        %672 = vmatprep.subr.mxu0 0.0
        %673 = vmatpush1.msra.mxu0 0.0
        %674 = vmatprep.subr.mxu0 0.0
        %675 = vmatpush1.msra.mxu0 0.0
        %676 = vmatprep.subr.mxu0 0.0
        %677 = vmatpush1.msra.mxu0 0.0
        %678 = vmatprep.subr.mxu0 0.0
        %679 = vmatpush1.msra.mxu0 0.0
        %680 = vmatprep.subr.mxu0 0.0
        %681 = vmatpush1.msra.mxu0 0.0
        %682 = vmatprep.subr.mxu0 0.0
        %683 = vmatpush1.msra.mxu0 0.0
        %684 = vmatprep.subr.mxu0 0.0
        %685 = vmatpush1.msra.mxu0 0.0
        %686 = vmatprep.subr.mxu0 0.0
        %687 = vmatpush1.msra.mxu0 0.0
        %688 = vmatprep.subr.mxu0 0.0
        %689 = vmatpush1.msra.mxu0 0.0
        %690 = vmatprep.subr.mxu0 0.0
        %691 = vmatpush1.msra.mxu0 0.0
        %692 = vmatprep.subr.mxu0 0.0
        %693 = vmatpush1.msra.mxu0 0.0
        %694 = vmatprep.subr.mxu0 0.0
        %695 = vmatpush1.msra.mxu0 0.0
        %696 = vmatprep.subr.mxu0 0.0
        %697 = vmatpush1.msra.mxu0 0.0
        %698 = vmatprep.subr.mxu0 0.0
        %699 = vmatpush1.msra.mxu0 0.0
        %700 = vmatprep.subr.mxu0 0.0
        %701 = vmatpush1.msra.mxu0 0.0
        %702 = vmatprep.subr.mxu0 0.0
        %703 = vmatpush1.msra.mxu0 0.0
        %704 = vmatprep.subr.mxu0 0.0
        %705 = vmatpush1.msra.mxu0 0.0
        %706 = vmatprep.subr.mxu0 0.0
        %707 = vmatpush1.msra.mxu0 0.0
        %708 = vmatprep.subr.mxu0 0.0
        %709 = vmatpush1.msra.mxu0 0.0
        %710 = vmatprep.subr.mxu0 0.0
        %711 = vmatpush1.msra.mxu0 0.0
        %712 = vmatprep.subr.mxu0 0.0
        %713 = vmatpush1.msra.mxu0 0.0
        %714 = vmatprep.subr.mxu0 0.0
        %715 = vmatpush1.msra.mxu0 0.0
        %716 = vmatprep.subr.mxu0 0.0
        %717 = vmatpush1.msra.mxu0 0.0
        %718 = vmatprep.subr.mxu0 0.0
        %719 = vmatpush1.msra.mxu0 0.0
        %720 = vmatprep.subr.mxu0 0.0
        %721 = vmatpush1.msra.mxu0 0.0
        %722 = vmatprep.mubr.f32.mxu0 0.0
        %723 = vmatmul.mubr.f32.gmra.mrb[0].mxu0 %v576
        %v724 = vpop.f32.mrb[0].mxu0
        %v725 = vadd.f32 1.0, %v724
        %v726 = vpop.f32.mrb[0].mxu0
        %v727 = vadd.f32 1.0, %v726
        %728 = vmatprep.mubr.f32.mxu0 0.0
        %729 = vmatmul.mubr.f32.gmra.mrb[0].mxu0 %v579
        %v730 = vpop.f32.mrb[0].mxu0
        %v731 = vadd.f32 1.0, %v730
        %v732 = vpop.f32.mrb[0].mxu0
        %v733 = vadd.f32 1.0, %v732
        %734 = vdwg.mxu0
        %v735 = vmul.f32 %v162, %v648
        %v736 = vmul.f32 %v163, %v650
        %v737 = vmul.f32 %v164, %v725
        %v738 = vmul.f32 %v165, %v727
        %v739 = vmul.f32 %v166, %v654
        %v740 = vmul.f32 %v167, %v656
        %v741 = vmul.f32 %v168, %v731
        %v742 = vmul.f32 %v169, %v733
        %743 = vst [vmem:[%s161] sm:$0xff] %v735
        %744 = vst [vmem:[%s161 + $0x8] sm:$0xff] %v736
        %745 = vst [vmem:[%s161 + $0x10] sm:$0xff] %v737
        %746 = vst [vmem:[%s161 + $0x18] sm:$0xff] %v738
        %747 = vst [vmem:[%s161 + $0x20] sm:$0xff] %v739
        %748 = vst [vmem:[%s161 + $0x28] sm:$0xff] %v740
        %749 = vst [vmem:[%s161 + $0x30] sm:$0xff] %v741
        %750 = vst [vmem:[%s161 + $0x38] sm:$0xff] %v742
        %s751 = sand.u32 %s74, 1
        %s752 = scalar_lea.sflag [#allocation4], %s751
        %s753 = sand.u32 %s74, 1
        %s754 = smul.addr %s753, 64
        %s755 = scalar_lea.vmem [#allocation5], %s754
        // Predicated region
        $region33: #{tpu_custom_call.1} parent=27 // pred_check
          %p756 = pneg %p84
        $region34: #{tpu_custom_call.1} parent=27 // pred_check_branch
          %758 = sbr.rel (%p756) target = $region36
        $region35: #{tpu_custom_call.1} parent=27 // pred_region
          %s760 = ssub.s32 1024, 1024
          %761 = vsyncadd %s752, %s760
          %s762 = smul.addr %s19, 8
          %s763 = smul.addr %s762, 128
          %s764 = scalar_lea.hbm %s2, %s763
          %s765 = sshll.u32 %s755, 4
          %s766 = int_to_ptr.vmem [resolvable:$true] %s765
          %771 = dma.vmem_to_hbm [thread:$0]  %s766, 1024, %s764, %s752, 512, 512, 32
        $region36: #{tpu_custom_call.1} parent=27 // pred_fallthru
          _
      $region28: #{tpu_custom_call.1} parent=5 // pred_fallthru
        _
      %p772 = scmp.le.s32.totalorder 2, %s14
      // Predicated region
      $region37: #{tpu_custom_call.1} parent=5 // pred_check
        %p773 = pneg %p772
      $region38: #{tpu_custom_call.1} parent=5 // pred_check_branch
        %775 = sbr.rel (%p773) target = $region40
      $region39: #{tpu_custom_call.1} parent=5 // pred_region
        %s776 = ssub.s32 %s14, 2
        // Predicated region
        $region41: #{tpu_custom_call.1} parent=39 // pred_check
          %p777 = pneg %p90
        $region42: #{tpu_custom_call.1} parent=39 // pred_check_branch
          %779 = sbr.rel (%p777) target = $region44
        $region43: #{tpu_custom_call.1} parent=39 // pred_region
          %s780 = sand.u32 %s75, 1
          %s781 = scalar_lea.sflag [#allocation4], %s780
          %s782 = sand.u32 %s75, 1
          %s783 = smul.addr %s782, 64
          %s784 = scalar_lea.vmem [#allocation5], %s783
          %785 = dma.done %s781, 1024
        $region44: #{tpu_custom_call.1} parent=39 // pred_fallthru
          _
      $region40: #{tpu_custom_call.1} parent=5 // pred_fallthru
        _
    $region6: #{tpu_custom_call.1} parent=1 // loop_footer
      %s18 = sadd.s32 1, %s14
    $region7: #{tpu_custom_call.1} parent=1 // loop_footer_branch
      %13 = sbr.rel target = $region3
    $region8: #{tpu_custom_call.1} parent=1 // loop_exit
      _
    %786 = vsyncpa [#allocation3], 1
    %s787 = scalar_lea.sflag [#allocation3], 1
    %788 = vsyncpa %s787, 1
    %789 = vsyncpa [#allocation4], 1
    %s790 = scalar_lea.sflag [#allocation4], 1
    %791 = vsyncpa %s790, 1

</llo_original>
